<compile_context>
chip_gen: v6e
topology: v6e:2x2x1
jax: 0.10.0
libtpu: 0.0.40
codegen_flags: <defaults>
</compile_context>

<pallas_src>
import functools

import numpy as np
import jax
import jax.numpy as jnp
from jax import lax
from jax.experimental import pallas as pl
from jax.experimental.pallas import tpu as pltpu


# ----------------------------- Pallas kernel ------------------------------

def _trilinear_sample_kernel(coords_ref, grid_ref, out_ref, *, resolution):
    """One tile of query points; whole flattened grid resident in VMEM.

    coords_ref: (3, TN)  rows = x, y, z in [-1, 1]
    grid_ref:   (C, R^3) flat index f = z*R^2 + y*R + x
    out_ref:    (C, TN)
    """
    R = resolution
    C, R3 = grid_ref.shape
    TN = coords_ref.shape[1]
    coords = coords_ref[...].astype(jnp.float32)            # (3, TN)

    def axis_weights(row):                                   # row: (1, TN)
        # align_corners=True unnormalize, then padding_mode='border' clamp.
        idx = jnp.clip((row + 1.0) * 0.5 * (R - 1), 0.0, float(R - 1))
        i0f = jnp.floor(idx)
        frac = idx - i0f                                     # (1, TN)
        i0 = i0f.astype(jnp.int32)                           # already in [0, R-1]
        i1 = jnp.minimum(i0 + 1, R - 1)
        sub_iota = lax.broadcasted_iota(jnp.int32, (R, TN), 0)
        # Two non-zeros per column; when i0 == i1 (border) they sum to 1.
        w = (jnp.where(sub_iota == i0, 1.0 - frac, 0.0)
             + jnp.where(sub_iota == i1, frac, 0.0))         # (R, TN)
        return w

    wx = axis_weights(coords[0:1, :])                        # x -> W axis (fastest)
    wy = axis_weights(coords[1:2, :])                        # y -> H axis
    wz = axis_weights(coords[2:3, :])                        # z -> D axis (slowest)

    # Outer product of per-axis weights, query index kept on the lane axis:
    #   W_T[(z*R + y)*R + x, n] = wz[z, n] * wy[y, n] * wx[x, n]
    wzy = (wz[:, None, :] * wy[None, :, :]).reshape(R * R, TN)   # (R^2, TN)
    w_t = (wzy[:, None, :] * wx[None, :, :]).reshape(R3, TN)     # (R^3, TN)

    out = jnp.dot(grid_ref[...], w_t,
                  preferred_element_type=jnp.float32)        # (C, TN)
    out_ref[...] = out.astype(out_ref.dtype)


def grid_sample_pallas(coords, grid_param, *, tile_n=512):
    """coords: (..., 3) in [-1,1]; grid_param: (C, R, R, R). Returns (N, C) f32."""
    C = int(grid_param.shape[0])
    R = int(grid_param.shape[1])
    R3 = R * R * R

    coords2 = coords.reshape(-1, coords.shape[-1]).astype(jnp.float32)
    N = coords2.shape[0]

    # Tile size: multiple of 128 lanes, large enough to amortize ~0.35us/step
    # grid overhead, but no bigger than the (rounded-up) problem size.
    tile_eff = max(128, min(tile_n, ((N + 127) // 128) * 128))
    n_pad = ((N + tile_eff - 1) // tile_eff) * tile_eff

    # (N, 3) -> padded -> (3, n_pad): each axis is a lane-dense row.
    coords_t = jnp.pad(coords2, ((0, n_pad - N), (0, 0))).T

    # (C, D, H, W) -> (C, R^3) row-major: f = z*R^2 + y*R + x (x fastest).
    grid_flat = grid_param.reshape(C, R3).astype(jnp.float32)

    kernel = functools.partial(_trilinear_sample_kernel, resolution=R)
    out_t = pl.pallas_call(
        kernel,
        out_shape=jax.ShapeDtypeStruct((C, n_pad), jnp.float32),
        grid_spec=pltpu.PrefetchScalarGridSpec(
            num_scalar_prefetch=0,
            grid=(n_pad // tile_eff,),
            in_specs=[
                pl.BlockSpec((3, tile_eff), lambda i: (0, i)),
                pl.BlockSpec((C, R3), lambda i: (0, 0)),   # resident (constant index)
            ],
            out_specs=pl.BlockSpec((C, tile_eff), lambda i: (0, i)),
        ),
        compiler_params=pltpu.CompilerParams(
            dimension_semantics=("parallel",)),
    )(coords_t, grid_flat)

    return out_t[:, :N].T                                   # (N, C)


# ----------------------------- Module wrapper ------------------------------

class Grid:
    """JAX/Pallas port of the PyTorch Grid module (dimension == 3 path)."""

    def __init__(self, dimension, max_params, out_features=1,
                 interpolation='bicubic'):
        resolution = int(np.floor(max_params ** (1.0 / dimension)))
        self.out_features = out_features
        self.dimension = dimension
        self.resolution = resolution
        # nn.Parameter(torch.ones(out_features, *[resolution]*dimension) * 0.1)
        self.grid = jnp.full((out_features,) + (resolution,) * dimension,
                             0.1, dtype=jnp.float32)
        self.num_params = resolution ** dimension
        if dimension == 3:
            self.interpolation = 'bilinear'
        else:
            self.interpolation = interpolation
            # TODO(synk): bicubic 2-D grid_sample path not implemented in Pallas.

    def forward(self, x):
        assert self.dimension == 3 and self.interpolation == 'bilinear', (
            "Pallas port implements the 3-D (trilinear) path of Grid.forward")
        coords = x.reshape(-1, x.shape[-1])                 # (N, 3)
        interp = grid_sample_pallas(coords, self.grid)      # (N, C)
        result = jnp.squeeze(interp.reshape(-1, self.out_features))
        return result


# ------------------------- pure-JAX reference check ------------------------

def _ref_grid_sample(coords2, grid_param):
    C, R = grid_param.shape[0], grid_param.shape[1]

    def axis_idx(c):
        idx = jnp.clip((c + 1.0) * 0.5 * (R - 1), 0.0, float(R - 1))
        i0f = jnp.floor(idx)
        frac = idx - i0f
        i0 = jnp.clip(i0f.astype(jnp.int32), 0, R - 1)
        i1 = jnp.clip(i0 + 1, 0, R - 1)
        return i0, i1, frac

    x, y, z = coords2[:, 0], coords2[:, 1], coords2[:, 2]
    ix0, ix1, fx = axis_idx(x)
    iy0, iy1, fy = axis_idx(y)
    iz0, iz1, fz = axis_idx(z)
    acc = jnp.zeros((coords2.shape[0], C), jnp.float32)
    for zi, wz in ((iz0, 1.0 - fz), (iz1, fz)):
        for yi, wy in ((iy0, 1.0 - fy), (iy1, fy)):
            for xi, wx in ((ix0, 1.0 - fx), (ix1, fx)):
                vals = grid_param[:, zi, yi, xi]            # (C, N)
                acc = acc + (wz * wy * wx)[:, None] * vals.T
    return acc


# ---------------------------------- main -----------------------------------

if __name__ == "__main__":
    key = jax.random.PRNGKey(0)
    k_coords, k_grid = jax.random.split(key)

    dimension, max_params, out_features = 3, 600, 1        # -> resolution 8
    model = Grid(dimension, max_params, out_features)

    # Query coords in [-1, 1]; forward flattens leading dims.
    x = jax.random.uniform(k_coords, (2, 8, 3), dtype=jnp.float32,
                           minval=-1.0, maxval=1.0)

    # Correctness check of the kernel against a pure-JAX trilinear reference
    # using a non-trivial (deterministic) grid.
    rand_grid = jax.random.normal(k_grid, model.grid.shape, jnp.float32)
    got = grid_sample_pallas(x.reshape(-1, 3), rand_grid)
    want = _ref_grid_sample(x.reshape(-1, 3), rand_grid)
    np.testing.assert_allclose(np.asarray(got), np.asarray(want),
                               rtol=1e-5, atol=1e-5)

    # Module-faithful forward (grid initialised to 0.1 as in __init__).
    result = model.forward(x)
    jax.block_until_ready(result)
    assert result.shape == (16,)
    np.testing.assert_allclose(np.asarray(result), 0.1, rtol=1e-5, atol=1e-6)

    print("KERNEL_OK")
</pallas_src>

<mosaic_0001>
module attributes {stable_mosaic.version = 11 : i64} {
  func.func @_trilinear_sample_kernel(%arg0: i32, %arg1: memref<3x128xf32, #tpu.memory_space<vmem>>, %arg2: memref<1x512xf32, #tpu.memory_space<vmem>>, %arg3: memref<1x128xf32, #tpu.memory_space<vmem>>) attributes {dimension_semantics = [#tpu.dimension_semantics<parallel>], iteration_bounds = array<i64: 1>, scalar_prefetch = 0 : i64, scratch_operands = 0 : i64, tpu.core_type = #tpu.core_type<tc>, window_params = [{transform_indices = @transform_0, window_bounds = array<i64: 3, 128>}, {pipeline_mode = #tpu.pipeline_mode<synchronous>, transform_indices = @transform_1, window_bounds = array<i64: 1, 512>}, {transform_indices = @transform_2, window_bounds = array<i64: 1, 128>}]} {
    %c0 = arith.constant 0 : index
    %c0_0 = arith.constant 0 : index
    %0 = vector.load %arg1[%c0, %c0_0] : memref<3x128xf32, #tpu.memory_space<vmem>>, vector<3x128xf32>
    %1 = vector.extract_strided_slice %0 {offsets = [0, 0], sizes = [1, 128], strides = [1, 1]} : vector<3x128xf32> to vector<1x128xf32>
    %cst = arith.constant 1.000000e+00 : f32
    %2 = vector.broadcast %cst : f32 to vector<1x128xf32>
    %3 = arith.addf %1, %2 : vector<1x128xf32>
    %cst_1 = arith.constant 5.000000e-01 : f32
    %4 = vector.broadcast %cst_1 : f32 to vector<1x128xf32>
    %5 = arith.mulf %3, %4 : vector<1x128xf32>
    %cst_2 = arith.constant 7.000000e+00 : f32
    %6 = vector.broadcast %cst_2 : f32 to vector<1x128xf32>
    %7 = arith.mulf %5, %6 : vector<1x128xf32>
    %cst_3 = arith.constant 0.000000e+00 : f32
    %cst_4 = arith.constant 7.000000e+00 : f32
    %8 = vector.broadcast %cst_3 : f32 to vector<1x128xf32>
    %9 = arith.maximumf %8, %7 : vector<1x128xf32>
    %10 = vector.broadcast %cst_4 : f32 to vector<1x128xf32>
    %11 = arith.minimumf %10, %9 : vector<1x128xf32>
    %12 = math.floor %11 : vector<1x128xf32>
    %13 = arith.subf %11, %12 : vector<1x128xf32>
    %14 = arith.fptosi %12 : vector<1x128xf32> to vector<1x128xi32>
    %c1_i32 = arith.constant 1 : i32
    %15 = vector.broadcast %c1_i32 : i32 to vector<1x128xi32>
    %16 = arith.addi %14, %15 : vector<1x128xi32>
    %c7_i32 = arith.constant 7 : i32
    %17 = vector.broadcast %c7_i32 : i32 to vector<1x128xi32>
    %18 = arith.minsi %16, %17 : vector<1x128xi32>
    %19 = tpu.iota {dimensions = array<i32: 0>} : vector<8x128xi32>
    %20 = vector.broadcast %14 : vector<1x128xi32> to vector<8x128xi32>
    %21 = arith.cmpi eq, %19, %20 : vector<8x128xi32>
    %cst_5 = arith.constant 1.000000e+00 : f32
    %22 = vector.broadcast %cst_5 : f32 to vector<1x128xf32>
    %23 = arith.subf %22, %13 : vector<1x128xf32>
    %cst_6 = arith.constant 0.000000e+00 : f32
    %24 = vector.shape_cast %23 : vector<1x128xf32> to vector<1x128xf32>
    %25 = vector.broadcast %24 : vector<1x128xf32> to vector<8x128xf32>
    %26 = vector.broadcast %cst_6 : f32 to vector<8x128xf32>
    %27 = arith.select %21, %25, %26 : vector<8x128xi1>, vector<8x128xf32>
    %28 = vector.broadcast %18 : vector<1x128xi32> to vector<8x128xi32>
    %29 = arith.cmpi eq, %19, %28 : vector<8x128xi32>
    %cst_7 = arith.constant 0.000000e+00 : f32
    %30 = vector.shape_cast %13 : vector<1x128xf32> to vector<1x128xf32>
    %31 = vector.broadcast %30 : vector<1x128xf32> to vector<8x128xf32>
    %32 = vector.broadcast %cst_7 : f32 to vector<8x128xf32>
    %33 = arith.select %29, %31, %32 : vector<8x128xi1>, vector<8x128xf32>
    %34 = arith.addf %27, %33 : vector<8x128xf32>
    %35 = vector.extract_strided_slice %0 {offsets = [1, 0], sizes = [1, 128], strides = [1, 1]} : vector<3x128xf32> to vector<1x128xf32>
    %cst_8 = arith.constant 1.000000e+00 : f32
    %36 = vector.broadcast %cst_8 : f32 to vector<1x128xf32>
    %37 = arith.addf %35, %36 : vector<1x128xf32>
    %cst_9 = arith.constant 5.000000e-01 : f32
    %38 = vector.broadcast %cst_9 : f32 to vector<1x128xf32>
    %39 = arith.mulf %37, %38 : vector<1x128xf32>
    %cst_10 = arith.constant 7.000000e+00 : f32
    %40 = vector.broadcast %cst_10 : f32 to vector<1x128xf32>
    %41 = arith.mulf %39, %40 : vector<1x128xf32>
    %cst_11 = arith.constant 0.000000e+00 : f32
    %cst_12 = arith.constant 7.000000e+00 : f32
    %42 = vector.broadcast %cst_11 : f32 to vector<1x128xf32>
    %43 = arith.maximumf %42, %41 : vector<1x128xf32>
    %44 = vector.broadcast %cst_12 : f32 to vector<1x128xf32>
    %45 = arith.minimumf %44, %43 : vector<1x128xf32>
    %46 = math.floor %45 : vector<1x128xf32>
    %47 = arith.subf %45, %46 : vector<1x128xf32>
    %48 = arith.fptosi %46 : vector<1x128xf32> to vector<1x128xi32>
    %c1_i32_13 = arith.constant 1 : i32
    %49 = vector.broadcast %c1_i32_13 : i32 to vector<1x128xi32>
    %50 = arith.addi %48, %49 : vector<1x128xi32>
    %c7_i32_14 = arith.constant 7 : i32
    %51 = vector.broadcast %c7_i32_14 : i32 to vector<1x128xi32>
    %52 = arith.minsi %50, %51 : vector<1x128xi32>
    %53 = tpu.iota {dimensions = array<i32: 0>} : vector<8x128xi32>
    %54 = vector.broadcast %48 : vector<1x128xi32> to vector<8x128xi32>
    %55 = arith.cmpi eq, %53, %54 : vector<8x128xi32>
    %cst_15 = arith.constant 1.000000e+00 : f32
    %56 = vector.broadcast %cst_15 : f32 to vector<1x128xf32>
    %57 = arith.subf %56, %47 : vector<1x128xf32>
    %cst_16 = arith.constant 0.000000e+00 : f32
    %58 = vector.shape_cast %57 : vector<1x128xf32> to vector<1x128xf32>
    %59 = vector.broadcast %58 : vector<1x128xf32> to vector<8x128xf32>
    %60 = vector.broadcast %cst_16 : f32 to vector<8x128xf32>
    %61 = arith.select %55, %59, %60 : vector<8x128xi1>, vector<8x128xf32>
    %62 = vector.broadcast %52 : vector<1x128xi32> to vector<8x128xi32>
    %63 = arith.cmpi eq, %53, %62 : vector<8x128xi32>
    %cst_17 = arith.constant 0.000000e+00 : f32
    %64 = vector.shape_cast %47 : vector<1x128xf32> to vector<1x128xf32>
    %65 = vector.broadcast %64 : vector<1x128xf32> to vector<8x128xf32>
    %66 = vector.broadcast %cst_17 : f32 to vector<8x128xf32>
    %67 = arith.select %63, %65, %66 : vector<8x128xi1>, vector<8x128xf32>
    %68 = arith.addf %61, %67 : vector<8x128xf32>
    %69 = vector.extract_strided_slice %0 {offsets = [2, 0], sizes = [1, 128], strides = [1, 1]} : vector<3x128xf32> to vector<1x128xf32>
    %cst_18 = arith.constant 1.000000e+00 : f32
    %70 = vector.broadcast %cst_18 : f32 to vector<1x128xf32>
    %71 = arith.addf %69, %70 : vector<1x128xf32>
    %cst_19 = arith.constant 5.000000e-01 : f32
    %72 = vector.broadcast %cst_19 : f32 to vector<1x128xf32>
    %73 = arith.mulf %71, %72 : vector<1x128xf32>
    %cst_20 = arith.constant 7.000000e+00 : f32
    %74 = vector.broadcast %cst_20 : f32 to vector<1x128xf32>
    %75 = arith.mulf %73, %74 : vector<1x128xf32>
    %cst_21 = arith.constant 0.000000e+00 : f32
    %cst_22 = arith.constant 7.000000e+00 : f32
    %76 = vector.broadcast %cst_21 : f32 to vector<1x128xf32>
    %77 = arith.maximumf %76, %75 : vector<1x128xf32>
    %78 = vector.broadcast %cst_22 : f32 to vector<1x128xf32>
    %79 = arith.minimumf %78, %77 : vector<1x128xf32>
    %80 = math.floor %79 : vector<1x128xf32>
    %81 = arith.subf %79, %80 : vector<1x128xf32>
    %82 = arith.fptosi %80 : vector<1x128xf32> to vector<1x128xi32>
    %c1_i32_23 = arith.constant 1 : i32
    %83 = vector.broadcast %c1_i32_23 : i32 to vector<1x128xi32>
    %84 = arith.addi %82, %83 : vector<1x128xi32>
    %c7_i32_24 = arith.constant 7 : i32
    %85 = vector.broadcast %c7_i32_24 : i32 to vector<1x128xi32>
    %86 = arith.minsi %84, %85 : vector<1x128xi32>
    %87 = tpu.iota {dimensions = array<i32: 0>} : vector<8x128xi32>
    %88 = vector.broadcast %82 : vector<1x128xi32> to vector<8x128xi32>
    %89 = arith.cmpi eq, %87, %88 : vector<8x128xi32>
    %cst_25 = arith.constant 1.000000e+00 : f32
    %90 = vector.broadcast %cst_25 : f32 to vector<1x128xf32>
    %91 = arith.subf %90, %81 : vector<1x128xf32>
    %cst_26 = arith.constant 0.000000e+00 : f32
    %92 = vector.shape_cast %91 : vector<1x128xf32> to vector<1x128xf32>
    %93 = vector.broadcast %92 : vector<1x128xf32> to vector<8x128xf32>
    %94 = vector.broadcast %cst_26 : f32 to vector<8x128xf32>
    %95 = arith.select %89, %93, %94 : vector<8x128xi1>, vector<8x128xf32>
    %96 = vector.broadcast %86 : vector<1x128xi32> to vector<8x128xi32>
    %97 = arith.cmpi eq, %87, %96 : vector<8x128xi32>
    %cst_27 = arith.constant 0.000000e+00 : f32
    %98 = vector.shape_cast %81 : vector<1x128xf32> to vector<1x128xf32>
    %99 = vector.broadcast %98 : vector<1x128xf32> to vector<8x128xf32>
    %100 = vector.broadcast %cst_27 : f32 to vector<8x128xf32>
    %101 = arith.select %97, %99, %100 : vector<8x128xi1>, vector<8x128xf32>
    %102 = arith.addf %95, %101 : vector<8x128xf32>
    %103 = vector.shape_cast %102 : vector<8x128xf32> to vector<8x1x128xf32>
    %104 = vector.shape_cast %68 : vector<8x128xf32> to vector<1x8x128xf32>
    %105 = vector.broadcast %103 : vector<8x1x128xf32> to vector<8x8x128xf32>
    %106 = vector.broadcast %104 : vector<1x8x128xf32> to vector<8x8x128xf32>
    %107 = arith.mulf %105, %106 : vector<8x8x128xf32>
    %108 = vector.shape_cast %107 : vector<8x8x128xf32> to vector<64x128xf32>
    %109 = vector.shape_cast %108 : vector<64x128xf32> to vector<64x1x128xf32>
    %110 = vector.shape_cast %34 : vector<8x128xf32> to vector<1x8x128xf32>
    %111 = vector.broadcast %109 : vector<64x1x128xf32> to vector<64x8x128xf32>
    %112 = vector.broadcast %110 : vector<1x8x128xf32> to vector<64x8x128xf32>
    %113 = arith.mulf %111, %112 : vector<64x8x128xf32>
    %114 = vector.shape_cast %113 : vector<64x8x128xf32> to vector<512x128xf32>
    %c0_28 = arith.constant 0 : index
    %c0_29 = arith.constant 0 : index
    %115 = vector.load %arg2[%c0_28, %c0_29] : memref<1x512xf32, #tpu.memory_space<vmem>>, vector<1x512xf32>
    %cst_30 = arith.constant dense<0.000000e+00> : vector<1x128xf32>
    %116 = tpu.matmul %115, %114, %cst_30 {dimension_numbers = #tpu.dot_dimension_numbers<[1], [0], [0], [1], [0, 0, 1, 1], [], []>} : vector<1x512xf32>, vector<512x128xf32>, vector<1x128xf32> -> vector<1x128xf32>
    %c0_31 = arith.constant 0 : index
    %c0_32 = arith.constant 0 : index
    %117 = vector.load %arg3[%c0_31, %c0_32] : memref<1x128xf32, #tpu.memory_space<vmem>>, vector<1x128xf32>
    tpu.vector_store %arg3[%c0_31, %c0_32], %116 {strides = array<i32>} : memref<1x128xf32, #tpu.memory_space<vmem>>, vector<1x128xf32>,
    return
  }
  func.func @transform_0(%arg0: i32) -> (i32, i32) {
    %c0_i32 = arith.constant 0 : i32
    %c0_i32_0 = arith.constant 0 : i32
    return %c0_i32, %arg0 : i32, i32
  }
  func.func @transform_1(%arg0: i32) -> (i32, i32) {
    %c0_i32 = arith.constant 0 : i32
    %c0_i32_0 = arith.constant 0 : i32
    %c0_i32_1 = arith.constant 0 : i32
    return %c0_i32, %c0_i32_0 : i32, i32
  }
  func.func @transform_2(%arg0: i32) -> (i32, i32) {
    %c0_i32 = arith.constant 0 : i32
    %c0_i32_0 = arith.constant 0 : i32
    return %c0_i32, %arg0 : i32, i32
  }
}

</mosaic_0001>

<llo_original>
// kernel: tpu_custom_call.1
$region0: #{tpu_custom_call.1}
  #allocation0 [shape = 'u32[]', space=smem, size = 0x4, offset = 0x4, fixed_abs, tag = 'smem constant byte address 0x4 - core index']
  #allocation1 [shape = 'u32[144,128]{1,0:T(1,128)}', space=vmem, size = 0x12000, scoped, tag = 'internal scratch']
  %s0 = inlined_call_operand.hbm [shape: f32[3,128], index: 0, kind: input, shape index: {}]
  %s1 = inlined_call_operand.hbm [shape: f32[1,512], index: 1, kind: input, shape index: {}]
  %s2 = inlined_call_operand.hbm [shape: f32[1,128], index: 2, kind: output, shape index: {}]
  %s3 = sld [smem:[#allocation0]]
  $region26: #{tpu_custom_call.1} parent=0
    _
  %s5 = ssub.s32 1, %s3
  %s6 = scalar_select 0, %s5, %s3
  $region1: #{tpu_custom_call.1} parent=0
    #allocation2 [shape = 'u8[2048]{0}', space=vmem, size = 0x800, scoped, tag = 'input window, operand 0, single buffered']
    #allocation3 [shape = 's32[1]{0}', space=sflag, size = 0x4, scoped, tag = 'scoped memory for tpu_custom_call.1']
    #allocation4 [shape = 's32[1]{0}', space=sflag, size = 0x4, scoped, tag = 'scoped memory for tpu_custom_call.1']
    #allocation5 [shape = 'u8[2048]{0}', space=vmem, size = 0x800, scoped, tag = 'input window, operand 1, single buffered']
    #allocation6 [shape = 's32[1]{0}', space=sflag, size = 0x4, scoped, tag = 'scoped memory for tpu_custom_call.1']
    #allocation7 [shape = 'u8[512]{0}', space=vmem, size = 0x400, scoped, tag = 'output window, operand 0, single buffered']
    %7 = vsyncpa [#allocation3], 0
    %8 = vsyncpa [#allocation6], 0
    %9 = vsyncpa [#allocation4], 0
    // Predicated region
    $region2: #{tpu_custom_call.1} parent=1 // pred_check
      _
    $region3: #{tpu_custom_call.1} parent=1 // pred_check_branch
      %11 = sbr.rel (0) target = $region5
    $region4: #{tpu_custom_call.1} parent=1 // pred_region
      %s13 = ssub.s32 64, 64
      %14 = vsyncadd [#allocation3], %s13
      %s16 = sshll.u32 [#allocation2], 4
      %s17 = int_to_ptr.vmem [resolvable:$true] %s16
      %19 = dma.hbm_to_vmem [thread:$0]  %s0, 64, %s17, [#allocation3]
    $region5: #{tpu_custom_call.1} parent=1 // pred_fallthru
      _
    // Predicated region
    $region6: #{tpu_custom_call.1} parent=1 // pred_check
      _
    $region7: #{tpu_custom_call.1} parent=1 // pred_check_branch
      %21 = sbr.rel (0) target = $region9
    $region8: #{tpu_custom_call.1} parent=1 // pred_region
      %s23 = ssub.s32 64, 64
      %24 = vsyncadd [#allocation6], %s23
      %s26 = sshll.u32 [#allocation5], 4
      %s27 = int_to_ptr.vmem [resolvable:$true] %s26
      %29 = dma.hbm_to_vmem [thread:$0]  %s1, 64, %s27, [#allocation6]
    $region9: #{tpu_custom_call.1} parent=1 // pred_fallthru
      _
    // Predicated region
    $region10: #{tpu_custom_call.1} parent=1 // pred_check
      _
    $region11: #{tpu_custom_call.1} parent=1 // pred_check_branch
      %31 = sbr.rel (0) target = $region13
    $region12: #{tpu_custom_call.1} parent=1 // pred_region
      %32 = dma.done [#allocation3], 64
    $region13: #{tpu_custom_call.1} parent=1 // pred_fallthru
      _
    // Predicated region
    $region14: #{tpu_custom_call.1} parent=1 // pred_check
      _
    $region15: #{tpu_custom_call.1} parent=1 // pred_check_branch
      %34 = sbr.rel (0) target = $region17
    $region16: #{tpu_custom_call.1} parent=1 // pred_region
      %35 = dma.done [#allocation6], 64
    $region17: #{tpu_custom_call.1} parent=1 // pred_fallthru
      _
    %v36 = vld [vmem:[#allocation2] sm:$0x7]
    %v37 = vadd.f32 %v36, 1.0
    %v38 = vmul.f32 %v37, 0.5
    %v39 = vmul.f32 %v38, 7.0
    %v40 = vmax.f32 %v39, 0.0
    %v41 = vmin.f32 %v40, 7.0
    %v42 = vfloor.f32 %v41
    %v43 = vsub.f32 %v41, %v42
    %v44 = vcvt.f32.s32.to.zero.pseudo %v42
    %v45 = vadd.s32 %v44, 1
    %vm46 = vcmp.lt.s32.totalorder %v45, 7
    %v47 = vsel %vm46, %v45, 7
    %v48 = vlaneseq
    %v49 = vshrl.u32 %v48, 7
    %v50 = vlaneseq
    %v51 = vshrl.u32 %v50, 7
    %v52 = vsub.s32 0, %v51
    %v53 = vrot.slane %v44, %v52
    %vm54 = vcmp.eq.s32.totalorder %v49, %v53
    %v55 = vsub.f32 1.0, %v43
    %v56 = vlaneseq
    %v57 = vshrl.u32 %v56, 7
    %v58 = vsub.s32 0, %v57
    %v59 = vrot.slane %v55, %v58
    %v60 = vsel %vm54, %v59, 0.0
    %v61 = vlaneseq
    %v62 = vshrl.u32 %v61, 7
    %v63 = vsub.s32 0, %v62
    %v64 = vrot.slane %v47, %v63
    %vm65 = vcmp.eq.s32.totalorder %v49, %v64
    %v66 = vlaneseq
    %v67 = vshrl.u32 %v66, 7
    %v68 = vsub.s32 0, %v67
    %v69 = vrot.slane %v43, %v68
    %v70 = vsel %vm65, %v69, 0.0
    %v71 = vadd.f32 %v60, %v70
    %v72 = vlaneseq
    %v73 = vshrl.u32 %v72, 7
    %v74 = vsub.s32 1, %v73
    %v75 = vrot.slane %v44, %v74
    %vm76 = vcmp.eq.s32.totalorder %v49, %v75
    %v77 = vlaneseq
    %v78 = vshrl.u32 %v77, 7
    %v79 = vsub.s32 1, %v78
    %v80 = vrot.slane %v55, %v79
    %v81 = vsel %vm76, %v80, 0.0
    %v82 = vlaneseq
    %v83 = vshrl.u32 %v82, 7
    %v84 = vsub.s32 1, %v83
    %v85 = vrot.slane %v47, %v84
    %vm86 = vcmp.eq.s32.totalorder %v49, %v85
    %v87 = vlaneseq
    %v88 = vshrl.u32 %v87, 7
    %v89 = vsub.s32 1, %v88
    %v90 = vrot.slane %v43, %v89
    %v91 = vsel %vm86, %v90, 0.0
    %v92 = vadd.f32 %v81, %v91
    %v93 = vlaneseq
    %v94 = vshrl.u32 %v93, 7
    %v95 = vsub.s32 2, %v94
    %v96 = vrot.slane %v44, %v95
    %vm97 = vcmp.eq.s32.totalorder %v49, %v96
    %v98 = vlaneseq
    %v99 = vshrl.u32 %v98, 7
    %v100 = vsub.s32 2, %v99
    %v101 = vrot.slane %v55, %v100
    %v102 = vsel %vm97, %v101, 0.0
    %v103 = vlaneseq
    %v104 = vshrl.u32 %v103, 7
    %v105 = vsub.s32 2, %v104
    %v106 = vrot.slane %v47, %v105
    %vm107 = vcmp.eq.s32.totalorder %v49, %v106
    %v108 = vlaneseq
    %v109 = vshrl.u32 %v108, 7
    %v110 = vsub.s32 2, %v109
    %v111 = vrot.slane %v43, %v110
    %v112 = vsel %vm107, %v111, 0.0
    %v113 = vadd.f32 %v102, %v112
    %v115 = vcombine.high %v113, %v113
    %v117 = vunpack.c.l.s4 1966171168
    %v118 = vunpack.c.0.s8 %v117
    %v119 = vlaneseq
    %v120 = vshrl.u32 %v119, 7
    %v121 = vsub.s32 %v118, %v120
    %v122 = vrot.slane %v113, %v121
    %v124 = vunpack.c.l.s4 1966171168
    %v125 = vunpack.c.0.s8 %v124
    %v126 = vlaneseq
    %v127 = vshrl.u32 %v126, 7
    %v128 = vsub.s32 %v125, %v127
    %v129 = vrot.slane %v115, %v128
    %v130 = vcombine.high %v122, %v122
    %v131 = vcombine.high %v129, %v129
    %v133 = vunpack.c.l.s4 1966171168
    %v134 = vunpack.c.0.s8 %v133
    %v135 = vlaneseq
    %v136 = vshrl.u32 %v135, 7
    %v137 = vsub.s32 %v134, %v136
    %v138 = vrot.slane %v122, %v137
    %v140 = vunpack.c.l.s4 1966171168
    %v141 = vunpack.c.0.s8 %v140
    %v142 = vlaneseq
    %v143 = vshrl.u32 %v142, 7
    %v144 = vsub.s32 %v141, %v143
    %v145 = vrot.slane %v129, %v144
    %v147 = vunpack.c.l.s4 1966171168
    %v148 = vunpack.c.0.s8 %v147
    %v149 = vlaneseq
    %v150 = vshrl.u32 %v149, 7
    %v151 = vsub.s32 %v148, %v150
    %v152 = vrot.slane %v130, %v151
    %v154 = vunpack.c.l.s4 1966171168
    %v155 = vunpack.c.0.s8 %v154
    %v156 = vlaneseq
    %v157 = vshrl.u32 %v156, 7
    %v158 = vsub.s32 %v155, %v157
    %v159 = vrot.slane %v131, %v158
    %v160 = vcombine.high %v138, %v138
    %v161 = vcombine.high %v145, %v145
    %v162 = vcombine.high %v152, %v152
    %v163 = vcombine.high %v159, %v159
    %v164 = vlaneseq
    %v165 = vshrl.u32 %v164, 7
    %v166 = vsub.s32 0, %v165
    %v167 = vrot.slane %v138, %v166
    %v168 = vlaneseq
    %v169 = vshrl.u32 %v168, 7
    %v170 = vsub.s32 0, %v169
    %v171 = vrot.slane %v152, %v170
    %v172 = vlaneseq
    %v173 = vshrl.u32 %v172, 7
    %v174 = vsub.s32 0, %v173
    %v175 = vrot.slane %v160, %v174
    %v176 = vlaneseq
    %v177 = vshrl.u32 %v176, 7
    %v178 = vsub.s32 0, %v177
    %v179 = vrot.slane %v162, %v178
    %v180 = vlaneseq
    %v181 = vshrl.u32 %v180, 7
    %v182 = vsub.s32 0, %v181
    %v183 = vrot.slane %v145, %v182
    %v184 = vlaneseq
    %v185 = vshrl.u32 %v184, 7
    %v186 = vsub.s32 0, %v185
    %v187 = vrot.slane %v159, %v186
    %v188 = vlaneseq
    %v189 = vshrl.u32 %v188, 7
    %v190 = vsub.s32 0, %v189
    %v191 = vrot.slane %v161, %v190
    %v192 = vlaneseq
    %v193 = vshrl.u32 %v192, 7
    %v194 = vsub.s32 0, %v193
    %v195 = vrot.slane %v163, %v194
    %v204 = vmul.f32 %v167, %v92
    %v205 = vmul.f32 %v171, %v92
    %v206 = vmul.f32 %v175, %v92
    %v207 = vmul.f32 %v179, %v92
    %v208 = vmul.f32 %v183, %v92
    %v209 = vmul.f32 %v187, %v92
    %v210 = vmul.f32 %v191, %v92
    %v211 = vmul.f32 %v195, %v92
    %v220 = vcombine.high %v204, %v204
    %v222 = vunpack.c.l.s4 1966171168
    %v223 = vunpack.c.0.s8 %v222
    %v224 = vlaneseq
    %v225 = vshrl.u32 %v224, 7
    %v226 = vsub.s32 %v223, %v225
    %v227 = vrot.slane %v204, %v226
    %v229 = vunpack.c.l.s4 1966171168
    %v230 = vunpack.c.0.s8 %v229
    %v231 = vlaneseq
    %v232 = vshrl.u32 %v231, 7
    %v233 = vsub.s32 %v230, %v232
    %v234 = vrot.slane %v220, %v233
    %v235 = vcombine.high %v227, %v227
    %v236 = vcombine.high %v234, %v234
    %v238 = vunpack.c.l.s4 1966171168
    %v239 = vunpack.c.0.s8 %v238
    %v240 = vlaneseq
    %v241 = vshrl.u32 %v240, 7
    %v242 = vsub.s32 %v239, %v241
    %v243 = vrot.slane %v227, %v242
    %v245 = vunpack.c.l.s4 1966171168
    %v246 = vunpack.c.0.s8 %v245
    %v247 = vlaneseq
    %v248 = vshrl.u32 %v247, 7
    %v249 = vsub.s32 %v246, %v248
    %v250 = vrot.slane %v234, %v249
    %v252 = vunpack.c.l.s4 1966171168
    %v253 = vunpack.c.0.s8 %v252
    %v254 = vlaneseq
    %v255 = vshrl.u32 %v254, 7
    %v256 = vsub.s32 %v253, %v255
    %v257 = vrot.slane %v235, %v256
    %v259 = vunpack.c.l.s4 1966171168
    %v260 = vunpack.c.0.s8 %v259
    %v261 = vlaneseq
    %v262 = vshrl.u32 %v261, 7
    %v263 = vsub.s32 %v260, %v262
    %v264 = vrot.slane %v236, %v263
    %v265 = vcombine.high %v243, %v243
    %v266 = vcombine.high %v250, %v250
    %v267 = vcombine.high %v257, %v257
    %v268 = vcombine.high %v264, %v264
    %v269 = vcombine.high %v205, %v205
    %v271 = vunpack.c.l.s4 1966171168
    %v272 = vunpack.c.0.s8 %v271
    %v273 = vlaneseq
    %v274 = vshrl.u32 %v273, 7
    %v275 = vsub.s32 %v272, %v274
    %v276 = vrot.slane %v205, %v275
    %v278 = vunpack.c.l.s4 1966171168
    %v279 = vunpack.c.0.s8 %v278
    %v280 = vlaneseq
    %v281 = vshrl.u32 %v280, 7
    %v282 = vsub.s32 %v279, %v281
    %v283 = vrot.slane %v269, %v282
    %v284 = vcombine.high %v276, %v276
    %v285 = vcombine.high %v283, %v283
    %v287 = vunpack.c.l.s4 1966171168
    %v288 = vunpack.c.0.s8 %v287
    %v289 = vlaneseq
    %v290 = vshrl.u32 %v289, 7
    %v291 = vsub.s32 %v288, %v290
    %v292 = vrot.slane %v276, %v291
    %v294 = vunpack.c.l.s4 1966171168
    %v295 = vunpack.c.0.s8 %v294
    %v296 = vlaneseq
    %v297 = vshrl.u32 %v296, 7
    %v298 = vsub.s32 %v295, %v297
    %v299 = vrot.slane %v283, %v298
    %v301 = vunpack.c.l.s4 1966171168
    %v302 = vunpack.c.0.s8 %v301
    %v303 = vlaneseq
    %v304 = vshrl.u32 %v303, 7
    %v305 = vsub.s32 %v302, %v304
    %v306 = vrot.slane %v284, %v305
    %v308 = vunpack.c.l.s4 1966171168
    %v309 = vunpack.c.0.s8 %v308
    %v310 = vlaneseq
    %v311 = vshrl.u32 %v310, 7
    %v312 = vsub.s32 %v309, %v311
    %v313 = vrot.slane %v285, %v312
    %v314 = vcombine.high %v292, %v292
    %v315 = vcombine.high %v299, %v299
    %v316 = vcombine.high %v306, %v306
    %v317 = vcombine.high %v313, %v313
    %v318 = vcombine.high %v206, %v206
    %v320 = vunpack.c.l.s4 1966171168
    %v321 = vunpack.c.0.s8 %v320
    %v322 = vlaneseq
    %v323 = vshrl.u32 %v322, 7
    %v324 = vsub.s32 %v321, %v323
    %v325 = vrot.slane %v206, %v324
    %v327 = vunpack.c.l.s4 1966171168
    %v328 = vunpack.c.0.s8 %v327
    %v329 = vlaneseq
    %v330 = vshrl.u32 %v329, 7
    %v331 = vsub.s32 %v328, %v330
    %v332 = vrot.slane %v318, %v331
    %v333 = vcombine.high %v325, %v325
    %v334 = vcombine.high %v332, %v332
    %v336 = vunpack.c.l.s4 1966171168
    %v337 = vunpack.c.0.s8 %v336
    %v338 = vlaneseq
    %v339 = vshrl.u32 %v338, 7
    %v340 = vsub.s32 %v337, %v339
    %v341 = vrot.slane %v325, %v340
    %v343 = vunpack.c.l.s4 1966171168
    %v344 = vunpack.c.0.s8 %v343
    %v345 = vlaneseq
    %v346 = vshrl.u32 %v345, 7
    %v347 = vsub.s32 %v344, %v346
    %v348 = vrot.slane %v332, %v347
    %v350 = vunpack.c.l.s4 1966171168
    %v351 = vunpack.c.0.s8 %v350
    %v352 = vlaneseq
    %v353 = vshrl.u32 %v352, 7
    %v354 = vsub.s32 %v351, %v353
    %v355 = vrot.slane %v333, %v354
    %v357 = vunpack.c.l.s4 1966171168
    %v358 = vunpack.c.0.s8 %v357
    %v359 = vlaneseq
    %v360 = vshrl.u32 %v359, 7
    %v361 = vsub.s32 %v358, %v360
    %v362 = vrot.slane %v334, %v361
    %v363 = vcombine.high %v341, %v341
    %v364 = vcombine.high %v348, %v348
    %v365 = vcombine.high %v355, %v355
    %v366 = vcombine.high %v362, %v362
    %v367 = vcombine.high %v207, %v207
    %v369 = vunpack.c.l.s4 1966171168
    %v370 = vunpack.c.0.s8 %v369
    %v371 = vlaneseq
    %v372 = vshrl.u32 %v371, 7
    %v373 = vsub.s32 %v370, %v372
    %v374 = vrot.slane %v207, %v373
    %v376 = vunpack.c.l.s4 1966171168
    %v377 = vunpack.c.0.s8 %v376
    %v378 = vlaneseq
    %v379 = vshrl.u32 %v378, 7
    %v380 = vsub.s32 %v377, %v379
    %v381 = vrot.slane %v367, %v380
    %v382 = vcombine.high %v374, %v374
    %v383 = vcombine.high %v381, %v381
    %v385 = vunpack.c.l.s4 1966171168
    %v386 = vunpack.c.0.s8 %v385
    %v387 = vlaneseq
    %v388 = vshrl.u32 %v387, 7
    %v389 = vsub.s32 %v386, %v388
    %v390 = vrot.slane %v374, %v389
    %v392 = vunpack.c.l.s4 1966171168
    %v393 = vunpack.c.0.s8 %v392
    %v394 = vlaneseq
    %v395 = vshrl.u32 %v394, 7
    %v396 = vsub.s32 %v393, %v395
    %v397 = vrot.slane %v381, %v396
    %v399 = vunpack.c.l.s4 1966171168
    %v400 = vunpack.c.0.s8 %v399
    %v401 = vlaneseq
    %v402 = vshrl.u32 %v401, 7
    %v403 = vsub.s32 %v400, %v402
    %v404 = vrot.slane %v382, %v403
    %v406 = vunpack.c.l.s4 1966171168
    %v407 = vunpack.c.0.s8 %v406
    %v408 = vlaneseq
    %v409 = vshrl.u32 %v408, 7
    %v410 = vsub.s32 %v407, %v409
    %v411 = vrot.slane %v383, %v410
    %v412 = vcombine.high %v390, %v390
    %v413 = vcombine.high %v397, %v397
    %v414 = vcombine.high %v404, %v404
    %v415 = vcombine.high %v411, %v411
    %v416 = vcombine.high %v208, %v208
    %v418 = vunpack.c.l.s4 1966171168
    %v419 = vunpack.c.0.s8 %v418
    %v420 = vlaneseq
    %v421 = vshrl.u32 %v420, 7
    %v422 = vsub.s32 %v419, %v421
    %v423 = vrot.slane %v208, %v422
    %v425 = vunpack.c.l.s4 1966171168
    %v426 = vunpack.c.0.s8 %v425
    %v427 = vlaneseq
    %v428 = vshrl.u32 %v427, 7
    %v429 = vsub.s32 %v426, %v428
    %v430 = vrot.slane %v416, %v429
    %v431 = vcombine.high %v423, %v423
    %v432 = vcombine.high %v430, %v430
    %v434 = vunpack.c.l.s4 1966171168
    %v435 = vunpack.c.0.s8 %v434
    %v436 = vlaneseq
    %v437 = vshrl.u32 %v436, 7
    %v438 = vsub.s32 %v435, %v437
    %v439 = vrot.slane %v423, %v438
    %v441 = vunpack.c.l.s4 1966171168
    %v442 = vunpack.c.0.s8 %v441
    %v443 = vlaneseq
    %v444 = vshrl.u32 %v443, 7
    %v445 = vsub.s32 %v442, %v444
    %v446 = vrot.slane %v430, %v445
    %v448 = vunpack.c.l.s4 1966171168
    %v449 = vunpack.c.0.s8 %v448
    %v450 = vlaneseq
    %v451 = vshrl.u32 %v450, 7
    %v452 = vsub.s32 %v449, %v451
    %v453 = vrot.slane %v431, %v452
    %v455 = vunpack.c.l.s4 1966171168
    %v456 = vunpack.c.0.s8 %v455
    %v457 = vlaneseq
    %v458 = vshrl.u32 %v457, 7
    %v459 = vsub.s32 %v456, %v458
    %v460 = vrot.slane %v432, %v459
    %v461 = vcombine.high %v439, %v439
    %v462 = vcombine.high %v446, %v446
    %v463 = vcombine.high %v453, %v453
    %v464 = vcombine.high %v460, %v460
    %v465 = vcombine.high %v209, %v209
    %v467 = vunpack.c.l.s4 1966171168
    %v468 = vunpack.c.0.s8 %v467
    %v469 = vlaneseq
    %v470 = vshrl.u32 %v469, 7
    %v471 = vsub.s32 %v468, %v470
    %v472 = vrot.slane %v209, %v471
    %v474 = vunpack.c.l.s4 1966171168
    %v475 = vunpack.c.0.s8 %v474
    %v476 = vlaneseq
    %v477 = vshrl.u32 %v476, 7
    %v478 = vsub.s32 %v475, %v477
    %v479 = vrot.slane %v465, %v478
    %v480 = vcombine.high %v472, %v472
    %v481 = vcombine.high %v479, %v479
    %v483 = vunpack.c.l.s4 1966171168
    %v484 = vunpack.c.0.s8 %v483
    %v485 = vlaneseq
    %v486 = vshrl.u32 %v485, 7
    %v487 = vsub.s32 %v484, %v486
    %v488 = vrot.slane %v472, %v487
    %v490 = vunpack.c.l.s4 1966171168
    %v491 = vunpack.c.0.s8 %v490
    %v492 = vlaneseq
    %v493 = vshrl.u32 %v492, 7
    %v494 = vsub.s32 %v491, %v493
    %v495 = vrot.slane %v479, %v494
    %v497 = vunpack.c.l.s4 1966171168
    %v498 = vunpack.c.0.s8 %v497
    %v499 = vlaneseq
    %v500 = vshrl.u32 %v499, 7
    %v501 = vsub.s32 %v498, %v500
    %v502 = vrot.slane %v480, %v501
    %v504 = vunpack.c.l.s4 1966171168
    %v505 = vunpack.c.0.s8 %v504
    %v506 = vlaneseq
    %v507 = vshrl.u32 %v506, 7
    %v508 = vsub.s32 %v505, %v507
    %v509 = vrot.slane %v481, %v508
    %v510 = vcombine.high %v488, %v488
    %v511 = vcombine.high %v495, %v495
    %v512 = vcombine.high %v502, %v502
    %v513 = vcombine.high %v509, %v509
    %v514 = vcombine.high %v210, %v210
    %v516 = vunpack.c.l.s4 1966171168
    %v517 = vunpack.c.0.s8 %v516
    %v518 = vlaneseq
    %v519 = vshrl.u32 %v518, 7
    %v520 = vsub.s32 %v517, %v519
    %v521 = vrot.slane %v210, %v520
    %v523 = vunpack.c.l.s4 1966171168
    %v524 = vunpack.c.0.s8 %v523
    %v525 = vlaneseq
    %v526 = vshrl.u32 %v525, 7
    %v527 = vsub.s32 %v524, %v526
    %v528 = vrot.slane %v514, %v527
    %v529 = vcombine.high %v521, %v521
    %v530 = vcombine.high %v528, %v528
    %v532 = vunpack.c.l.s4 1966171168
    %v533 = vunpack.c.0.s8 %v532
    %v534 = vlaneseq
    %v535 = vshrl.u32 %v534, 7
    %v536 = vsub.s32 %v533, %v535
    %v537 = vrot.slane %v521, %v536
    %v539 = vunpack.c.l.s4 1966171168
    %v540 = vunpack.c.0.s8 %v539
    %v541 = vlaneseq
    %v542 = vshrl.u32 %v541, 7
    %v543 = vsub.s32 %v540, %v542
    %v544 = vrot.slane %v528, %v543
    %v546 = vunpack.c.l.s4 1966171168
    %v547 = vunpack.c.0.s8 %v546
    %v548 = vlaneseq
    %v549 = vshrl.u32 %v548, 7
    %v550 = vsub.s32 %v547, %v549
    %v551 = vrot.slane %v529, %v550
    %v553 = vunpack.c.l.s4 1966171168
    %v554 = vunpack.c.0.s8 %v553
    %v555 = vlaneseq
    %v556 = vshrl.u32 %v555, 7
    %v557 = vsub.s32 %v554, %v556
    %v558 = vrot.slane %v530, %v557
    %v559 = vcombine.high %v537, %v537
    %v560 = vcombine.high %v544, %v544
    %v561 = vcombine.high %v551, %v551
    %v562 = vcombine.high %v558, %v558
    %v563 = vcombine.high %v211, %v211
    %v565 = vunpack.c.l.s4 1966171168
    %v566 = vunpack.c.0.s8 %v565
    %v567 = vlaneseq
    %v568 = vshrl.u32 %v567, 7
    %v569 = vsub.s32 %v566, %v568
    %v570 = vrot.slane %v211, %v569
    %v572 = vunpack.c.l.s4 1966171168
    %v573 = vunpack.c.0.s8 %v572
    %v574 = vlaneseq
    %v575 = vshrl.u32 %v574, 7
    %v576 = vsub.s32 %v573, %v575
    %v577 = vrot.slane %v563, %v576
    %v578 = vcombine.high %v570, %v570
    %v579 = vcombine.high %v577, %v577
    %v581 = vunpack.c.l.s4 1966171168
    %v582 = vunpack.c.0.s8 %v581
    %v583 = vlaneseq
    %v584 = vshrl.u32 %v583, 7
    %v585 = vsub.s32 %v582, %v584
    %v586 = vrot.slane %v570, %v585
    %v588 = vunpack.c.l.s4 1966171168
    %v589 = vunpack.c.0.s8 %v588
    %v590 = vlaneseq
    %v591 = vshrl.u32 %v590, 7
    %v592 = vsub.s32 %v589, %v591
    %v593 = vrot.slane %v577, %v592
    %v595 = vunpack.c.l.s4 1966171168
    %v596 = vunpack.c.0.s8 %v595
    %v597 = vlaneseq
    %v598 = vshrl.u32 %v597, 7
    %v599 = vsub.s32 %v596, %v598
    %v600 = vrot.slane %v578, %v599
    %v602 = vunpack.c.l.s4 1966171168
    %v603 = vunpack.c.0.s8 %v602
    %v604 = vlaneseq
    %v605 = vshrl.u32 %v604, 7
    %v606 = vsub.s32 %v603, %v605
    %v607 = vrot.slane %v579, %v606
    %v608 = vcombine.high %v586, %v586
    %v609 = vcombine.high %v593, %v593
    %v610 = vcombine.high %v600, %v600
    %v611 = vcombine.high %v607, %v607
    %v612 = vlaneseq
    %v613 = vshrl.u32 %v612, 7
    %v614 = vsub.s32 0, %v613
    %v615 = vrot.slane %v243, %v614
    %v616 = vlaneseq
    %v617 = vshrl.u32 %v616, 7
    %v618 = vsub.s32 0, %v617
    %v619 = vrot.slane %v257, %v618
    %v620 = vlaneseq
    %v621 = vshrl.u32 %v620, 7
    %v622 = vsub.s32 0, %v621
    %v623 = vrot.slane %v265, %v622
    %v624 = vlaneseq
    %v625 = vshrl.u32 %v624, 7
    %v626 = vsub.s32 0, %v625
    %v627 = vrot.slane %v267, %v626
    %v628 = vlaneseq
    %v629 = vshrl.u32 %v628, 7
    %v630 = vsub.s32 0, %v629
    %v631 = vrot.slane %v250, %v630
    %v632 = vlaneseq
    %v633 = vshrl.u32 %v632, 7
    %v634 = vsub.s32 0, %v633
    %v635 = vrot.slane %v264, %v634
    %v636 = vlaneseq
    %v637 = vshrl.u32 %v636, 7
    %v638 = vsub.s32 0, %v637
    %v639 = vrot.slane %v266, %v638
    %v640 = vlaneseq
    %v641 = vshrl.u32 %v640, 7
    %v642 = vsub.s32 0, %v641
    %v643 = vrot.slane %v268, %v642
    %v644 = vlaneseq
    %v645 = vshrl.u32 %v644, 7
    %v646 = vsub.s32 0, %v645
    %v647 = vrot.slane %v292, %v646
    %v648 = vlaneseq
    %v649 = vshrl.u32 %v648, 7
    %v650 = vsub.s32 0, %v649
    %v651 = vrot.slane %v306, %v650
    %v652 = vlaneseq
    %v653 = vshrl.u32 %v652, 7
    %v654 = vsub.s32 0, %v653
    %v655 = vrot.slane %v314, %v654
    %v656 = vlaneseq
    %v657 = vshrl.u32 %v656, 7
    %v658 = vsub.s32 0, %v657
    %v659 = vrot.slane %v316, %v658
    %v660 = vlaneseq
    %v661 = vshrl.u32 %v660, 7
    %v662 = vsub.s32 0, %v661
    %v663 = vrot.slane %v299, %v662
    %v664 = vlaneseq
    %v665 = vshrl.u32 %v664, 7
    %v666 = vsub.s32 0, %v665
    %v667 = vrot.slane %v313, %v666
    %v668 = vlaneseq
    %v669 = vshrl.u32 %v668, 7
    %v670 = vsub.s32 0, %v669
    %v671 = vrot.slane %v315, %v670
    %v672 = vlaneseq
    %v673 = vshrl.u32 %v672, 7
    %v674 = vsub.s32 0, %v673
    %v675 = vrot.slane %v317, %v674
    %v676 = vlaneseq
    %v677 = vshrl.u32 %v676, 7
    %v678 = vsub.s32 0, %v677
    %v679 = vrot.slane %v341, %v678
    %v680 = vlaneseq
    %v681 = vshrl.u32 %v680, 7
    %v682 = vsub.s32 0, %v681
    %v683 = vrot.slane %v355, %v682
    %v684 = vlaneseq
    %v685 = vshrl.u32 %v684, 7
    %v686 = vsub.s32 0, %v685
    %v687 = vrot.slane %v363, %v686
    %v688 = vlaneseq
    %v689 = vshrl.u32 %v688, 7
    %v690 = vsub.s32 0, %v689
    %v691 = vrot.slane %v365, %v690
    %v692 = vlaneseq
    %v693 = vshrl.u32 %v692, 7
    %v694 = vsub.s32 0, %v693
    %v695 = vrot.slane %v348, %v694
    %v696 = vlaneseq
    %v697 = vshrl.u32 %v696, 7
    %v698 = vsub.s32 0, %v697
    %v699 = vrot.slane %v362, %v698
    %v700 = vlaneseq
    %v701 = vshrl.u32 %v700, 7
    %v702 = vsub.s32 0, %v701
    %v703 = vrot.slane %v364, %v702
    %v704 = vlaneseq
    %v705 = vshrl.u32 %v704, 7
    %v706 = vsub.s32 0, %v705
    %v707 = vrot.slane %v366, %v706
    %v708 = vlaneseq
    %v709 = vshrl.u32 %v708, 7
    %v710 = vsub.s32 0, %v709
    %v711 = vrot.slane %v390, %v710
    %v712 = vlaneseq
    %v713 = vshrl.u32 %v712, 7
    %v714 = vsub.s32 0, %v713
    %v715 = vrot.slane %v404, %v714
    %v716 = vlaneseq
    %v717 = vshrl.u32 %v716, 7
    %v718 = vsub.s32 0, %v717
    %v719 = vrot.slane %v412, %v718
    %v720 = vlaneseq
    %v721 = vshrl.u32 %v720, 7
    %v722 = vsub.s32 0, %v721
    %v723 = vrot.slane %v414, %v722
    %v724 = vlaneseq
    %v725 = vshrl.u32 %v724, 7
    %v726 = vsub.s32 0, %v725
    %v727 = vrot.slane %v397, %v726
    %v728 = vlaneseq
    %v729 = vshrl.u32 %v728, 7
    %v730 = vsub.s32 0, %v729
    %v731 = vrot.slane %v411, %v730
    %v732 = vlaneseq
    %v733 = vshrl.u32 %v732, 7
    %v734 = vsub.s32 0, %v733
    %v735 = vrot.slane %v413, %v734
    %v736 = vlaneseq
    %v737 = vshrl.u32 %v736, 7
    %v738 = vsub.s32 0, %v737
    %v739 = vrot.slane %v415, %v738
    %v740 = vlaneseq
    %v741 = vshrl.u32 %v740, 7
    %v742 = vsub.s32 0, %v741
    %v743 = vrot.slane %v439, %v742
    %v744 = vlaneseq
    %v745 = vshrl.u32 %v744, 7
    %v746 = vsub.s32 0, %v745
    %v747 = vrot.slane %v453, %v746
    %v748 = vlaneseq
    %v749 = vshrl.u32 %v748, 7
    %v750 = vsub.s32 0, %v749
    %v751 = vrot.slane %v461, %v750
    %v752 = vlaneseq
    %v753 = vshrl.u32 %v752, 7
    %v754 = vsub.s32 0, %v753
    %v755 = vrot.slane %v463, %v754
    %v756 = vlaneseq
    %v757 = vshrl.u32 %v756, 7
    %v758 = vsub.s32 0, %v757
    %v759 = vrot.slane %v446, %v758
    %v760 = vlaneseq
    %v761 = vshrl.u32 %v760, 7
    %v762 = vsub.s32 0, %v761
    %v763 = vrot.slane %v460, %v762
    %v764 = vlaneseq
    %v765 = vshrl.u32 %v764, 7
    %v766 = vsub.s32 0, %v765
    %v767 = vrot.slane %v462, %v766
    %v768 = vlaneseq
    %v769 = vshrl.u32 %v768, 7
    %v770 = vsub.s32 0, %v769
    %v771 = vrot.slane %v464, %v770
    %v772 = vlaneseq
    %v773 = vshrl.u32 %v772, 7
    %v774 = vsub.s32 0, %v773
    %v775 = vrot.slane %v488, %v774
    %v776 = vlaneseq
    %v777 = vshrl.u32 %v776, 7
    %v778 = vsub.s32 0, %v777
    %v779 = vrot.slane %v502, %v778
    %v780 = vlaneseq
    %v781 = vshrl.u32 %v780, 7
    %v782 = vsub.s32 0, %v781
    %v783 = vrot.slane %v510, %v782
    %v784 = vlaneseq
    %v785 = vshrl.u32 %v784, 7
    %v786 = vsub.s32 0, %v785
    %v787 = vrot.slane %v512, %v786
    %v788 = vlaneseq
    %v789 = vshrl.u32 %v788, 7
    %v790 = vsub.s32 0, %v789
    %v791 = vrot.slane %v495, %v790
    %v792 = vlaneseq
    %v793 = vshrl.u32 %v792, 7
    %v794 = vsub.s32 0, %v793
    %v795 = vrot.slane %v509, %v794
    %v796 = vlaneseq
    %v797 = vshrl.u32 %v796, 7
    %v798 = vsub.s32 0, %v797
    %v799 = vrot.slane %v511, %v798
    %v800 = vlaneseq
    %v801 = vshrl.u32 %v800, 7
    %v802 = vsub.s32 0, %v801
    %v803 = vrot.slane %v513, %v802
    %v804 = vlaneseq
    %v805 = vshrl.u32 %v804, 7
    %v806 = vsub.s32 0, %v805
    %v807 = vrot.slane %v537, %v806
    %v808 = vlaneseq
    %v809 = vshrl.u32 %v808, 7
    %v810 = vsub.s32 0, %v809
    %v811 = vrot.slane %v551, %v810
    %v812 = vlaneseq
    %v813 = vshrl.u32 %v812, 7
    %v814 = vsub.s32 0, %v813
    %v815 = vrot.slane %v559, %v814
    %v816 = vlaneseq
    %v817 = vshrl.u32 %v816, 7
    %v818 = vsub.s32 0, %v817
    %v819 = vrot.slane %v561, %v818
    %v820 = vlaneseq
    %v821 = vshrl.u32 %v820, 7
    %v822 = vsub.s32 0, %v821
    %v823 = vrot.slane %v544, %v822
    %v824 = vlaneseq
    %v825 = vshrl.u32 %v824, 7
    %v826 = vsub.s32 0, %v825
    %v827 = vrot.slane %v558, %v826
    %v828 = vlaneseq
    %v829 = vshrl.u32 %v828, 7
    %v830 = vsub.s32 0, %v829
    %v831 = vrot.slane %v560, %v830
    %v832 = vlaneseq
    %v833 = vshrl.u32 %v832, 7
    %v834 = vsub.s32 0, %v833
    %v835 = vrot.slane %v562, %v834
    %v836 = vlaneseq
    %v837 = vshrl.u32 %v836, 7
    %v838 = vsub.s32 0, %v837
    %v839 = vrot.slane %v586, %v838
    %v840 = vlaneseq
    %v841 = vshrl.u32 %v840, 7
    %v842 = vsub.s32 0, %v841
    %v843 = vrot.slane %v600, %v842
    %v844 = vlaneseq
    %v845 = vshrl.u32 %v844, 7
    %v846 = vsub.s32 0, %v845
    %v847 = vrot.slane %v608, %v846
    %v848 = vlaneseq
    %v849 = vshrl.u32 %v848, 7
    %v850 = vsub.s32 0, %v849
    %v851 = vrot.slane %v610, %v850
    %v852 = vlaneseq
    %v853 = vshrl.u32 %v852, 7
    %v854 = vsub.s32 0, %v853
    %v855 = vrot.slane %v593, %v854
    %v856 = vlaneseq
    %v857 = vshrl.u32 %v856, 7
    %v858 = vsub.s32 0, %v857
    %v859 = vrot.slane %v607, %v858
    %v860 = vlaneseq
    %v861 = vshrl.u32 %v860, 7
    %v862 = vsub.s32 0, %v861
    %v863 = vrot.slane %v609, %v862
    %v864 = vlaneseq
    %v865 = vshrl.u32 %v864, 7
    %v866 = vsub.s32 0, %v865
    %v867 = vrot.slane %v611, %v866
    %v932 = vmul.f32 %v615, %v71
    %v933 = vmul.f32 %v619, %v71
    %v934 = vmul.f32 %v623, %v71
    %v935 = vmul.f32 %v627, %v71
    %v936 = vmul.f32 %v631, %v71
    %v937 = vmul.f32 %v635, %v71
    %v938 = vmul.f32 %v639, %v71
    %v939 = vmul.f32 %v643, %v71
    %v940 = vmul.f32 %v647, %v71
    %v941 = vmul.f32 %v651, %v71
    %v942 = vmul.f32 %v655, %v71
    %v943 = vmul.f32 %v659, %v71
    %v944 = vmul.f32 %v663, %v71
    %v945 = vmul.f32 %v667, %v71
    %v946 = vmul.f32 %v671, %v71
    %v947 = vmul.f32 %v675, %v71
    %v948 = vmul.f32 %v679, %v71
    %v949 = vmul.f32 %v683, %v71
    %v950 = vmul.f32 %v687, %v71
    %v951 = vmul.f32 %v691, %v71
    %v952 = vmul.f32 %v695, %v71
    %v953 = vmul.f32 %v699, %v71
    %v954 = vmul.f32 %v703, %v71
    %v955 = vmul.f32 %v707, %v71
    %v956 = vmul.f32 %v711, %v71
    %v957 = vmul.f32 %v715, %v71
    %v958 = vmul.f32 %v719, %v71
    %v959 = vmul.f32 %v723, %v71
    %v960 = vmul.f32 %v727, %v71
    %v961 = vmul.f32 %v731, %v71
    %v962 = vmul.f32 %v735, %v71
    %v963 = vmul.f32 %v739, %v71
    %v964 = vmul.f32 %v743, %v71
    %v965 = vmul.f32 %v747, %v71
    %v966 = vmul.f32 %v751, %v71
    %v967 = vmul.f32 %v755, %v71
    %v968 = vmul.f32 %v759, %v71
    %v969 = vmul.f32 %v763, %v71
    %v970 = vmul.f32 %v767, %v71
    %v971 = vmul.f32 %v771, %v71
    %v972 = vmul.f32 %v775, %v71
    %v973 = vmul.f32 %v779, %v71
    %v974 = vmul.f32 %v783, %v71
    %v975 = vmul.f32 %v787, %v71
    %v976 = vmul.f32 %v791, %v71
    %v977 = vmul.f32 %v795, %v71
    %v978 = vmul.f32 %v799, %v71
    %v979 = vmul.f32 %v803, %v71
    %v980 = vmul.f32 %v807, %v71
    %v981 = vmul.f32 %v811, %v71
    %v982 = vmul.f32 %v815, %v71
    %v983 = vmul.f32 %v819, %v71
    %v984 = vmul.f32 %v823, %v71
    %v985 = vmul.f32 %v827, %v71
    %v986 = vmul.f32 %v831, %v71
    %v987 = vmul.f32 %v835, %v71
    %v988 = vmul.f32 %v839, %v71
    %v989 = vmul.f32 %v843, %v71
    %v990 = vmul.f32 %v847, %v71
    %v991 = vmul.f32 %v851, %v71
    %v992 = vmul.f32 %v855, %v71
    %v993 = vmul.f32 %v859, %v71
    %v994 = vmul.f32 %v863, %v71
    %v995 = vmul.f32 %v867, %v71
    %v996 = vld [vmem:[#allocation5] sm:$0xf]
    %v998 = vlaneseq
    %v999 = vshrl.u32 %v998, 7
    %v1000 = vsub.s32 0, %v999
    %v1001 = vrot.slane %v996, %v1000
    %v1002 = vlaneseq
    %v1003 = vshrl.u32 %v1002, 7
    %v1004 = vsub.s32 1, %v1003
    %v1005 = vrot.slane %v996, %v1004
    %v1006 = vlaneseq
    %v1007 = vshrl.u32 %v1006, 7
    %v1008 = vsub.s32 2, %v1007
    %v1009 = vrot.slane %v996, %v1008
    %v1010 = vlaneseq
    %v1011 = vshrl.u32 %v1010, 7
    %v1012 = vsub.s32 3, %v1011
    %v1013 = vrot.slane %v996, %v1012
    %1018 = vmatprep.subr.mxu0 0.0
    %1019 = vmatpush1.msra.mxu0 %v947
    %1020 = vmatprep.subr.mxu0 0.0
    %1021 = vmatpush1.msra.mxu0 %v946
    %1022 = vmatprep.subr.mxu0 0.0
    %1023 = vmatpush1.msra.mxu0 %v945
    %1024 = vmatprep.subr.mxu0 0.0
    %1025 = vmatpush1.msra.mxu0 %v944
    %1026 = vmatprep.subr.mxu0 0.0
    %1027 = vmatpush1.msra.mxu0 %v943
    %1028 = vmatprep.subr.mxu0 0.0
    %1029 = vmatpush1.msra.mxu0 %v942
    %1030 = vmatprep.subr.mxu0 0.0
    %1031 = vmatpush1.msra.mxu0 %v941
    %1032 = vmatprep.subr.mxu0 0.0
    %1033 = vmatpush1.msra.mxu0 %v940
    %1034 = vmatprep.subr.mxu0 0.0
    %1035 = vmatpush1.msra.mxu0 %v939
    %1036 = vmatprep.subr.mxu0 0.0
    %1037 = vmatpush1.msra.mxu0 %v938
    %1038 = vmatprep.subr.mxu0 0.0
    %1039 = vmatpush1.msra.mxu0 %v937
    %1040 = vmatprep.subr.mxu0 0.0
    %1041 = vmatpush1.msra.mxu0 %v936
    %1042 = vmatprep.subr.mxu0 0.0
    %1043 = vmatpush1.msra.mxu0 %v935
    %1044 = vmatprep.subr.mxu0 0.0
    %1045 = vmatpush1.msra.mxu0 %v934
    %1046 = vmatprep.subr.mxu0 0.0
    %1047 = vmatpush1.msra.mxu0 %v933
    %1048 = vmatprep.subr.mxu0 0.0
    %1049 = vmatpush1.msra.mxu0 %v932
    %1050 = vmatprep.subr.mxu0 0.0
    %1051 = vmatpush2.msra.mxu0 %v963
    %1052 = vmatprep.subr.mxu0 0.0
    %1053 = vmatpush2.msra.mxu0 %v962
    %1054 = vmatprep.subr.mxu0 0.0
    %1055 = vmatpush2.msra.mxu0 %v961
    %1056 = vmatprep.subr.mxu0 0.0
    %1057 = vmatpush2.msra.mxu0 %v960
    %1058 = vmatprep.subr.mxu0 0.0
    %1059 = vmatpush2.msra.mxu0 %v959
    %1060 = vmatprep.subr.mxu0 0.0
    %1061 = vmatpush2.msra.mxu0 %v958
    %1062 = vmatprep.subr.mxu0 0.0
    %1063 = vmatpush2.msra.mxu0 %v957
    %1064 = vmatprep.subr.mxu0 0.0
    %1065 = vmatpush2.msra.mxu0 %v956
    %1066 = vmatprep.subr.mxu0 0.0
    %1067 = vmatpush2.msra.mxu0 %v955
    %1068 = vmatprep.subr.mxu0 0.0
    %1069 = vmatpush2.msra.mxu0 %v954
    %1070 = vmatprep.subr.mxu0 0.0
    %1071 = vmatpush2.msra.mxu0 %v953
    %1072 = vmatprep.subr.mxu0 0.0
    %1073 = vmatpush2.msra.mxu0 %v952
    %1074 = vmatprep.subr.mxu0 0.0
    %1075 = vmatpush2.msra.mxu0 %v951
    %1076 = vmatprep.subr.mxu0 0.0
    %1077 = vmatpush2.msra.mxu0 %v950
    %1078 = vmatprep.subr.mxu0 0.0
    %1079 = vmatpush2.msra.mxu0 %v949
    %1080 = vmatprep.subr.mxu0 0.0
    %1081 = vmatpush2.msra.mxu0 %v948
    %1082 = vmatprep.mubr.f32.mxu0 %v1005
    %1083 = vmatmul.mubr.f32.gmra.mxu0 %v1001
    %v1084 = vpop.f32.mrf.mxu0
    %v1085 = vadd.f32 0.0, %v1084
    %v1086 = vpop.f32.mrf.mxu0
    %1087 = vdwg.mxu0
    %1088 = vmatprep.subr.mxu0 0.0
    %1089 = vmatpush1.msra.mxu0 %v979
    %1090 = vmatprep.subr.mxu0 0.0
    %1091 = vmatpush1.msra.mxu0 %v978
    %1092 = vmatprep.subr.mxu0 0.0
    %1093 = vmatpush1.msra.mxu0 %v977
    %1094 = vmatprep.subr.mxu0 0.0
    %1095 = vmatpush1.msra.mxu0 %v976
    %1096 = vmatprep.subr.mxu0 0.0
    %1097 = vmatpush1.msra.mxu0 %v975
    %1098 = vmatprep.subr.mxu0 0.0
    %1099 = vmatpush1.msra.mxu0 %v974
    %1100 = vmatprep.subr.mxu0 0.0
    %1101 = vmatpush1.msra.mxu0 %v973
    %1102 = vmatprep.subr.mxu0 0.0
    %1103 = vmatpush1.msra.mxu0 %v972
    %1104 = vmatprep.subr.mxu0 0.0
    %1105 = vmatpush1.msra.mxu0 %v971
    %1106 = vmatprep.subr.mxu0 0.0
    %1107 = vmatpush1.msra.mxu0 %v970
    %1108 = vmatprep.subr.mxu0 0.0
    %1109 = vmatpush1.msra.mxu0 %v969
    %1110 = vmatprep.subr.mxu0 0.0
    %1111 = vmatpush1.msra.mxu0 %v968
    %1112 = vmatprep.subr.mxu0 0.0
    %1113 = vmatpush1.msra.mxu0 %v967
    %1114 = vmatprep.subr.mxu0 0.0
    %1115 = vmatpush1.msra.mxu0 %v966
    %1116 = vmatprep.subr.mxu0 0.0
    %1117 = vmatpush1.msra.mxu0 %v965
    %1118 = vmatprep.subr.mxu0 0.0
    %1119 = vmatpush1.msra.mxu0 %v964
    %1120 = vmatprep.subr.mxu0 0.0
    %1121 = vmatpush2.msra.mxu0 %v995
    %1122 = vmatprep.subr.mxu0 0.0
    %1123 = vmatpush2.msra.mxu0 %v994
    %1124 = vmatprep.subr.mxu0 0.0
    %1125 = vmatpush2.msra.mxu0 %v993
    %1126 = vmatprep.subr.mxu0 0.0
    %1127 = vmatpush2.msra.mxu0 %v992
    %1128 = vmatprep.subr.mxu0 0.0
    %1129 = vmatpush2.msra.mxu0 %v991
    %1130 = vmatprep.subr.mxu0 0.0
    %1131 = vmatpush2.msra.mxu0 %v990
    %1132 = vmatprep.subr.mxu0 0.0
    %1133 = vmatpush2.msra.mxu0 %v989
    %1134 = vmatprep.subr.mxu0 0.0
    %1135 = vmatpush2.msra.mxu0 %v988
    %1136 = vmatprep.subr.mxu0 0.0
    %1137 = vmatpush2.msra.mxu0 %v987
    %1138 = vmatprep.subr.mxu0 0.0
    %1139 = vmatpush2.msra.mxu0 %v986
    %1140 = vmatprep.subr.mxu0 0.0
    %1141 = vmatpush2.msra.mxu0 %v985
    %1142 = vmatprep.subr.mxu0 0.0
    %1143 = vmatpush2.msra.mxu0 %v984
    %1144 = vmatprep.subr.mxu0 0.0
    %1145 = vmatpush2.msra.mxu0 %v983
    %1146 = vmatprep.subr.mxu0 0.0
    %1147 = vmatpush2.msra.mxu0 %v982
    %1148 = vmatprep.subr.mxu0 0.0
    %1149 = vmatpush2.msra.mxu0 %v981
    %1150 = vmatprep.subr.mxu0 0.0
    %1151 = vmatpush2.msra.mxu0 %v980
    %1152 = vmatprep.mubr.f32.mxu0 %v1013
    %1153 = vmatmul.mubr.f32.gmra.mxu0 %v1009
    %v1154 = vpop.f32.mrf.mxu0
    %v1155 = vadd.f32 %v1085, %v1154
    %v1156 = vpop.f32.mrf.mxu0
    %1157 = vdwg.mxu0
    %1158 = vst [vmem:[#allocation7] sm:$0x1] %v1155
    // Predicated region
    $region18: #{tpu_custom_call.1} parent=1 // pred_check
      _
    $region19: #{tpu_custom_call.1} parent=1 // pred_check_branch
      %1160 = sbr.rel (0) target = $region21
    $region20: #{tpu_custom_call.1} parent=1 // pred_region
      %s1162 = ssub.s32 16, 16
      %1163 = vsyncadd [#allocation4], %s1162
      %s1165 = sshll.u32 [#allocation7], 4
      %s1166 = int_to_ptr.vmem [resolvable:$true] %s1165
      %1168 = dma.vmem_to_hbm [thread:$0]  %s1166, 16, %s2, [#allocation4]
    $region21: #{tpu_custom_call.1} parent=1 // pred_fallthru
      _
    // Predicated region
    $region22: #{tpu_custom_call.1} parent=1 // pred_check
      _
    $region23: #{tpu_custom_call.1} parent=1 // pred_check_branch
      %1170 = sbr.rel (0) target = $region25
    $region24: #{tpu_custom_call.1} parent=1 // pred_region
      %1171 = dma.done [#allocation4], 16
    $region25: #{tpu_custom_call.1} parent=1 // pred_fallthru
      _
    %1172 = vsyncpa [#allocation3], 1
    %1173 = vsyncpa [#allocation6], 1
    %1174 = vsyncpa [#allocation4], 1

</llo_original>
